<compile_context>
chip_gen: v5e
topology: v5e:2x2
jax: 0.10.0
libtpu: 0.0.40
codegen_flags: <defaults>
</compile_context>

<pallas_src>
import math

import numpy as np

import jax
import jax.numpy as jnp
from jax.experimental import pallas as pl
from jax.experimental.pallas import tpu as pltpu

EPS = 1e-5
ACT_DTYPE = jnp.bfloat16   # dtype of HBM-resident activations / weights


def _round_up(x, m):
    return -(-x // m) * m


# ----------------------------------------------------------------------------
# Per-generation VMEM limit (v5e/v6e: 128 MiB physical, v7x: 64 MiB)
# ----------------------------------------------------------------------------
def _vmem_limit_bytes():
    cap = 0
    try:
        info = pltpu.get_tpu_info()
        for name in ("vmem_capacity_bytes", "vmem_bytes", "vmem_size_bytes"):
            val = getattr(info, name, None)
            if isinstance(val, int) and val > 0:
                cap = int(val)
                break
    except Exception:
        cap = 0
    if cap <= 0:
        cap = 64 * 1024 * 1024            # conservative (v7x-sized) default
    return (cap * 3) // 4                 # leave scoped headroom for Mosaic


# ----------------------------------------------------------------------------
# pltpu.roll sign-convention probe (one tiny kernel, cached).  Pins the rotate
# direction so the conv taps cannot be silently mirrored across jax versions.
# ----------------------------------------------------------------------------
_ROLL_MATCHES_NUMPY = None


def _roll_convention():
    global _ROLL_MATCHES_NUMPY
    if _ROLL_MATCHES_NUMPY is None:
        def probe(x_ref, o_ref):
            o_ref[...] = pltpu.roll(x_ref[...], 1, 0)

        x = jnp.broadcast_to(
            jnp.arange(8, dtype=jnp.float32)[:, None], (8, 128))
        out = pl.pallas_call(
            probe,
            out_shape=jax.ShapeDtypeStruct((8, 128), jnp.float32),
            in_specs=[pl.BlockSpec(memory_space=pltpu.MemorySpace.VMEM)],
            out_specs=pl.BlockSpec(memory_space=pltpu.MemorySpace.VMEM),
        )(x)
        v = float(jax.device_get(out)[1, 0])
        if v == 0.0:          # out[r] = x[r - shift]  (numpy/jnp.roll convention)
            _ROLL_MATCHES_NUMPY = True
        elif v == 2.0:        # out[r] = x[r + shift]
            _ROLL_MATCHES_NUMPY = False
        else:
            raise RuntimeError(f"unexpected pltpu.roll semantics (probe={v})")
    return _ROLL_MATCHES_NUMPY


# ----------------------------------------------------------------------------
# Conv (+ optional input affine/ReLU) + per-band BN statistics kernel
# ----------------------------------------------------------------------------
def _make_conv_stats_kernel(H, W, Wp, Cin, Cout, apply_relu, roll_np):
    Hp = H + 2
    R = Hp * Wp                    # rows of the flattened padded slab
    HWp = H * Wp                   # rows of the flattened conv output
    inv_cnt = 1.0 / float(H * W)   # valid elements per band

    def shift_rows(x, delta):
        # y[r] = x[(r + delta) % R] along the sublane (row) axis (XLU slot).
        d = delta % R
        if d == 0:
            return x
        amount = (R - d) if roll_np else d
        return pltpu.roll(x, amount, 0)

    def colmask(channels):
        # column-validity mask, generated in-kernel (cols >= W are padding)
        col = jax.lax.broadcasted_iota(jnp.int32, (Wp, channels), 0)
        return (col < W).astype(jnp.float32).reshape(1, Wp, channels)

    def kernel(x_ref, w_ref, scale_ref, shift_ref, y_ref, stats_ref, pad_ref):
        # x_ref:     (1, H, Wp, Cin)  bf16  activation band (one image)
        # w_ref:     (9, Cin, Cout)   bf16  taps ordered (dy, dx), resident
        # scale_ref: (1, Cin) f32     affine applied to the input (pass2: BN1)
        # shift_ref: (1, Cin) f32
        # y_ref:     (1, H, Wp, Cout)       raw (pre-BN) conv output
        # stats_ref: (1, 2, Cout) f32       [band mean, band-centered M2]
        # pad_ref:   (Hp, Wp, Cin) f32      H-padded, column-masked input slab
        mask_in = colmask(Cin)

        # affine (+ReLU) on the incoming band; mask restores the zero tail
        xb = x_ref[...].reshape(H, Wp, Cin).astype(jnp.float32)
        y_in = (xb * scale_ref[...].reshape(1, 1, Cin)
                + shift_ref[...].reshape(1, 1, Cin))
        if apply_relu:
            y_in = jnp.maximum(y_in, 0.0)
        y_in = y_in * mask_in

        # padded slab: only the two halo rows zeroed, interior stored once
        zero_row = jnp.zeros((1, Wp, Cin), jnp.float32)
        pad_ref[0:1, :, :] = zero_row
        pad_ref[Hp - 1:Hp, :, :] = zero_row
        pad_ref[1:H + 1, :, :] = y_in

        slab = pad_ref[...].reshape(R, Cin)

        # 3x3 conv: one +-1 roll per dx (2 rolls total), static dy row slices,
        # 9 MXU matmuls; DEFAULT precision (bf16 operands, f32 accumulation).
        # Accumulator is initialized from the first tap's product (no zeros).
        acc = None
        for dx in (0, -1, 1):
            s = slab if dx == 0 else shift_rows(slab, dx)
            for dy in range(3):
                tap = s[dy * Wp: dy * Wp + HWp, :]
                wk = w_ref[3 * dy + dx + 1].astype(jnp.float32)   # (Cin, Cout)
                p = jnp.dot(tap, wk, preferred_element_type=jnp.float32)
                acc = p if acc is None else acc + p

        acc3 = acc.reshape(H, Wp, Cout)
        mask_out = colmask(Cout)

        # per-band BN statistics: band mean + band-centered sum of squares
        # (numerically stable; combined exactly across bands in the wrapper)
        accm = (acc3 * mask_out).reshape(HWp, Cout)
        mean = jnp.sum(accm, axis=0, keepdims=True) * inv_cnt          # (1, Cout)
        diff = ((acc3 - mean.reshape(1, 1, Cout)) * mask_out).reshape(HWp, Cout)
        m2 = jnp.sum(diff * diff, axis=0, keepdims=True)               # (1, Cout)
        stats_ref[:, 0:1, :] = mean.reshape(1, 1, Cout)
        stats_ref[:, 1:2, :] = m2.reshape(1, 1, Cout)

        # raw (pre-BN) conv output; cols >= W are garbage, masked downstream
        y_ref[...] = acc3.reshape(1, H, Wp, Cout).astype(y_ref.dtype)

    return kernel


def _conv_bn_stats_pass(x_band, w, scale_in, shift_in, *, W, apply_relu,
                        out_dtype, vmem_limit):
    N, H, Wp, Cin = x_band.shape
    Cout = w.shape[-1]
    Hp = H + 2
    kernel = _make_conv_stats_kernel(H, W, Wp, Cin, Cout, apply_relu,
                                     _roll_convention())

    flops = 2 * N * H * W * 9 * Cin * Cout
    bytes_accessed = (x_band.size * np.dtype(x_band.dtype).itemsize
                      + w.size * np.dtype(w.dtype).itemsize
                      + N * H * Wp * Cout * np.dtype(out_dtype).itemsize
                      + N * 2 * Cout * 4 + 8 * Cin)

    y_raw, stats = pl.pallas_call(
        kernel,
        grid=(N,),
        out_shape=(jax.ShapeDtypeStruct((N, H, Wp, Cout), out_dtype),
                   jax.ShapeDtypeStruct((N, 2, Cout), jnp.float32)),
        in_specs=[
            pl.BlockSpec((1, H, Wp, Cin), lambda n: (n, 0, 0, 0)),
            pl.BlockSpec((9, Cin, Cout), lambda n: (0, 0, 0)),    # resident
            pl.BlockSpec((1, Cin), lambda n: (0, 0)),
            pl.BlockSpec((1, Cin), lambda n: (0, 0)),
        ],
        out_specs=(
            pl.BlockSpec((1, H, Wp, Cout), lambda n: (n, 0, 0, 0)),
            pl.BlockSpec((1, 2, Cout), lambda n: (n, 0, 0)),
        ),
        scratch_shapes=[pltpu.VMEM((Hp, Wp, Cin), jnp.float32)],
        compiler_params=pltpu.CompilerParams(
            dimension_semantics=("parallel",),
            vmem_limit_bytes=int(vmem_limit)),
        cost_estimate=pl.CostEstimate(flops=flops, transcendentals=0,
                                      bytes_accessed=int(bytes_accessed)),
    )(x_band, w, scale_in, shift_in)
    return y_raw, stats


# ----------------------------------------------------------------------------
# BN2-apply + residual-add kernel (fully parallel elementwise epilogue)
# ----------------------------------------------------------------------------
def _make_residual_kernel(C):
    def kernel(y2_ref, x_ref, scale_ref, shift_ref, o_ref):
        scale = scale_ref[...].reshape(1, 1, 1, C)
        shift = shift_ref[...].reshape(1, 1, 1, C)
        o_ref[...] = x_ref[...] + (y2_ref[...] * scale + shift)
    return kernel


def _residual_pass(y2_raw, x_pad, scale2, shift2, *, vmem_limit):
    N, H, Wp, C = y2_raw.shape
    kernel = _make_residual_kernel(C)
    return pl.pallas_call(
        kernel,
        grid=(N,),
        out_shape=jax.ShapeDtypeStruct((N, H, Wp, C), jnp.float32),
        in_specs=[
            pl.BlockSpec((1, H, Wp, C), lambda n: (n, 0, 0, 0)),
            pl.BlockSpec((1, H, Wp, C), lambda n: (n, 0, 0, 0)),
            pl.BlockSpec((1, C), lambda n: (0, 0)),
            pl.BlockSpec((1, C), lambda n: (0, 0)),
        ],
        out_specs=pl.BlockSpec((1, H, Wp, C), lambda n: (n, 0, 0, 0)),
        compiler_params=pltpu.CompilerParams(
            dimension_semantics=("parallel",),
            vmem_limit_bytes=int(vmem_limit)),
    )(y2_raw, x_pad, scale2, shift2)


# ----------------------------------------------------------------------------
# Exact combination of per-band BN moments -> folded (scale, shift) affine
# ----------------------------------------------------------------------------
def _bn_affine(stats, gamma, beta, count_band):
    # stats: (n_bands, 2, C) with [band mean, band-centered sum of squares].
    mean_b = stats[:, 0, :]                               # (n_bands, C)
    m2_b = stats[:, 1, :]                                 # (n_bands, C)
    n_bands = stats.shape[0]
    mean = jnp.mean(mean_b, axis=0, keepdims=True)        # (1, C)
    m2 = (jnp.sum(m2_b, axis=0, keepdims=True)
          + count_band * jnp.sum((mean_b - mean) ** 2, axis=0, keepdims=True))
    var = m2 / float(n_bands * count_band)                # biased, over N*H*W
    scale = gamma * jax.lax.rsqrt(var + EPS)
    shift = beta - mean * scale
    return scale, shift


# ----------------------------------------------------------------------------
# Wrapper (NCHW <-> NHWC glue, padding, three pallas_call passes)
# ----------------------------------------------------------------------------
def resnet_block(x_nchw, params):
    """x_nchw: (N, C, H, W) float32 -> (N, C, H, W) float32."""
    w1, _b1, g1, be1, w2, _b2, g2, be2 = params   # conv biases cancel in BN
    N, C, H, W = x_nchw.shape
    Wp = _round_up(W + 1, 8)
    vmem_limit = _vmem_limit_bytes()

    x_nhwc = jnp.transpose(x_nchw, (0, 2, 3, 1)).astype(jnp.float32)
    # interior at cols [0, W); zero tail cols [W, Wp) double as conv padding
    x_pad = jnp.pad(x_nhwc, ((0, 0), (0, 0), (0, Wp - W), (0, 0)))
    x_bf16 = x_pad.astype(ACT_DTYPE)
    w1_bf16 = w1.astype(ACT_DTYPE)
    w2_bf16 = w2.astype(ACT_DTYPE)

    one = jnp.ones((1, C), jnp.float32)
    zero = jnp.zeros((1, C), jnp.float32)

    # pass 1: conv1 -> raw activations (bf16) + per-band BN1 stats
    y1_raw, s1 = _conv_bn_stats_pass(
        x_bf16, w1_bf16, one, zero,
        W=W, apply_relu=False, out_dtype=ACT_DTYPE, vmem_limit=vmem_limit)
    scale1, shift1 = _bn_affine(s1, g1, be1, H * W)

    # pass 2: BN1 + ReLU + conv2 -> raw activations (f32) + per-band BN2 stats
    y2_raw, s2 = _conv_bn_stats_pass(
        y1_raw, w2_bf16, scale1, shift1,
        W=W, apply_relu=True, out_dtype=jnp.float32, vmem_limit=vmem_limit)
    scale2, shift2 = _bn_affine(s2, g2, be2, H * W)

    # pass 3: BN2 + residual add (original f32 x band reloaded here)
    out_pad = _residual_pass(y2_raw, x_pad, scale2, shift2,
                             vmem_limit=vmem_limit)

    out_nhwc = out_pad[:, :, :W, :]                # drop the width padding
    return jnp.transpose(out_nhwc, (0, 3, 1, 2))


# ----------------------------------------------------------------------------
# Parameters / pure-JAX reference
# ----------------------------------------------------------------------------
def init_params(key, c_in, c_out, k=3):
    """Mirrors ResNetBlock.__init__: conv weights = sqrt(2), BN gamma=1 beta=0,
    conv biases ~ U(+-1/sqrt(fan_in)).  Weights stored (9, Cin, Cout), taps
    ordered (dy, dx)."""
    k1, k2 = jax.random.split(key)
    b1_bound = 1.0 / math.sqrt(c_in * k * k)
    b2_bound = 1.0 / math.sqrt(c_out * k * k)
    w1 = jnp.full((k * k, c_in, c_out), math.sqrt(2.0), jnp.float32)
    w2 = jnp.full((k * k, c_out, c_out), math.sqrt(2.0), jnp.float32)
    b1 = jax.random.uniform(k1, (1, c_out), jnp.float32, -b1_bound, b1_bound)
    b2 = jax.random.uniform(k2, (1, c_out), jnp.float32, -b2_bound, b2_bound)
    g1 = jnp.ones((1, c_out), jnp.float32)
    be1 = jnp.zeros((1, c_out), jnp.float32)
    g2 = jnp.ones((1, c_out), jnp.float32)
    be2 = jnp.zeros((1, c_out), jnp.float32)
    return (w1, b1, g1, be1, w2, b2, g2, be2)


def reference_block(x, params, c):
    """Pure-JAX (XLA, HIGHEST precision) reference of the PyTorch forward, NCHW."""
    w1, b1, g1, be1, w2, b2, g2, be2 = params

    def conv(x, w, b):
        w_oihw = jnp.transpose(w.reshape(3, 3, c, c), (3, 2, 0, 1))
        y = jax.lax.conv_general_dilated(
            x, w_oihw, (1, 1), ((1, 1), (1, 1)),
            dimension_numbers=("NCHW", "OIHW", "NCHW"),
            precision=jax.lax.Precision.HIGHEST)
        return y + b.reshape(1, -1, 1, 1)

    def bn(y, g, be):
        mean = jnp.mean(y, axis=(0, 2, 3), keepdims=True)
        var = jnp.mean((y - mean) ** 2, axis=(0, 2, 3), keepdims=True)
        return (g.reshape(1, -1, 1, 1) * (y - mean) / jnp.sqrt(var + EPS)
                + be.reshape(1, -1, 1, 1))

    y = jax.nn.relu(bn(conv(x, w1, b1), g1, be1))
    y = bn(conv(y, w2, b2), g2, be2)
    return x + y


if __name__ == "__main__":
    key = jax.random.PRNGKey(0)
    kx, kp, kw = jax.random.split(key, 3)

    N, C, H, W = 2, 4, 16, 16  # small version of the (512-channel) module
    x = jax.random.normal(kx, (N, C, H, W), jnp.float32)

    # Kernel matmuls use the MXU DEFAULT path (bf16 operands, f32 accumulate)
    # and bf16 HBM activations; reference is f32/HIGHEST.
    RTOL = ATOL = 2e-2

    # 1) module-faithful parameters (constant sqrt(2) conv weights)
    params = init_params(kp, C, C)
    out = jax.block_until_ready(resnet_block(x, params))
    ref = reference_block(x, params, C)
    assert out.shape == (N, C, H, W)
    if not jnp.allclose(out, ref, rtol=RTOL, atol=ATOL):
        err = float(jnp.max(jnp.abs(out - ref)))
        raise AssertionError(f"mismatch vs reference (module init), max|err|={err}")

    # 2) random-weight variant: constant-weight init cannot detect spatial tap
    #    misalignment, so additionally verify with random weights.
    k1, k2 = jax.random.split(kw)
    w1r = 0.3 * jax.random.normal(k1, (9, C, C), jnp.float32)
    w2r = 0.3 * jax.random.normal(k2, (9, C, C), jnp.float32)
    params_r = (w1r, params[1], params[2], params[3],
                w2r, params[5], params[6], params[7])
    out_r = jax.block_until_ready(resnet_block(x, params_r))
    ref_r = reference_block(x, params_r, C)
    if not jnp.allclose(out_r, ref_r, rtol=RTOL, atol=ATOL):
        err = float(jnp.max(jnp.abs(out_r - ref_r)))
        raise AssertionError(f"mismatch vs reference (random weights), max|err|={err}")

    print("KERNEL_OK")
</pallas_src>

<mosaic_0001>
module attributes {stable_mosaic.version = 11 : i64} {
  func.func @probe(%arg0: memref<8x128xf32, #tpu.memory_space<vmem>>, %arg1: memref<8x128xf32, #tpu.memory_space<vmem>>) attributes {dimension_semantics = [], scalar_prefetch = 0 : i64, scratch_operands = 0 : i64, tpu.core_type = #tpu.core_type<tc>} {
    %c0 = arith.constant 0 : index
    %c0_0 = arith.constant 0 : index
    %0 = vector.load %arg0[%c0, %c0_0] : memref<8x128xf32, #tpu.memory_space<vmem>>, vector<8x128xf32>
    %c1_i32 = arith.constant 1 : i32
    %1 = tpu.dynamic_rotate %0 by %c1_i32 dim 0 : vector<8x128xf32>, i32 -> vector<8x128xf32>
    %c0_1 = arith.constant 0 : index
    %c0_2 = arith.constant 0 : index
    %2 = vector.load %arg1[%c0_1, %c0_2] : memref<8x128xf32, #tpu.memory_space<vmem>>, vector<8x128xf32>
    tpu.vector_store %arg1[%c0_1, %c0_2], %1 {strides = array<i32>} : memref<8x128xf32, #tpu.memory_space<vmem>>, vector<8x128xf32>,
    return
  }
}

</mosaic_0001>

<llo_original>
// kernel: tpu_custom_call.1
$region0: #{tpu_custom_call.1}
  #allocation0 [shape = 'u32[]', space=smem, size = 0x4, offset = 0x4, fixed_abs, tag = 'smem constant byte address 0x4 - core index']
  #allocation1 [shape = 'u32[72,128]{1,0:T(1,128)}', space=vmem, size = 0x9000, scoped, tag = 'internal scratch']
  %s0 = inlined_call_operand.hbm [shape: f32[8,128], index: 0, kind: input, shape index: {}]
  %s1 = inlined_call_operand.hbm [shape: f32[8,128], index: 1, kind: output, shape index: {}]
  %s2 = sld [smem:[#allocation0]]
  $region18: #{tpu_custom_call.1} parent=0
    _
  %s4 = ssub.s32 1, %s2
  %s5 = scalar_select 0, %s4, %s2
  $region1: #{tpu_custom_call.1} parent=0
    #allocation2 [shape = 'u8[4096]{0}', space=vmem, size = 0x1000, scoped, tag = 'input window, operand 0, single buffered']
    #allocation3 [shape = 's32[1]{0}', space=sflag, size = 0x4, scoped, tag = 'scoped memory for tpu_custom_call.1']
    #allocation4 [shape = 's32[1]{0}', space=sflag, size = 0x4, scoped, tag = 'scoped memory for tpu_custom_call.1']
    #allocation5 [shape = 'u8[4096]{0}', space=vmem, size = 0x1000, scoped, tag = 'output window, operand 0, single buffered']
    %6 = vsyncpa [#allocation3], 0
    %7 = vsyncpa [#allocation4], 0
    // Predicated region
    $region2: #{tpu_custom_call.1} parent=1 // pred_check
      _
    $region3: #{tpu_custom_call.1} parent=1 // pred_check_branch
      %9 = sbr.rel (0) target = $region5
    $region4: #{tpu_custom_call.1} parent=1 // pred_region
      %11 = vsyncadd [#allocation3], 0
      %s13 = sshll.u32 %s0, 4
      %s14 = int_to_ptr.hbm [resolvable:$true] %s13
      %s15 = sshll.u32 [#allocation2], 4
      %s16 = int_to_ptr.vmem [resolvable:$true] %s15
      %18 = dma.hbm_to_vmem [thread:$0]  %s14, 128, %s16, [#allocation3]
    $region5: #{tpu_custom_call.1} parent=1 // pred_fallthru
      _
    // Predicated region
    $region6: #{tpu_custom_call.1} parent=1 // pred_check
      _
    $region7: #{tpu_custom_call.1} parent=1 // pred_check_branch
      %20 = sbr.rel (0) target = $region9
    $region8: #{tpu_custom_call.1} parent=1 // pred_region
      %22 = dma.done [#allocation3], 128
    $region9: #{tpu_custom_call.1} parent=1 // pred_fallthru
      _
    %v23 = vld [vmem:[#allocation2] sm:$0xff]
    %v24 = vrot.slane %v23, 7
    %25 = vst [vmem:[#allocation5] sm:$0xff] %v24
    // Predicated region
    $region10: #{tpu_custom_call.1} parent=1 // pred_check
      _
    $region11: #{tpu_custom_call.1} parent=1 // pred_check_branch
      %27 = sbr.rel (0) target = $region13
    $region12: #{tpu_custom_call.1} parent=1 // pred_region
      %29 = vsyncadd [#allocation4], 0
      %s31 = sshll.u32 [#allocation5], 4
      %s32 = int_to_ptr.vmem [resolvable:$true] %s31
      %s33 = sshll.u32 %s1, 4
      %s34 = int_to_ptr.hbm [resolvable:$true] %s33
      %36 = dma.vmem_to_hbm [thread:$0]  %s32, 128, %s34, [#allocation4]
    $region13: #{tpu_custom_call.1} parent=1 // pred_fallthru
      _
    // Predicated region
    $region14: #{tpu_custom_call.1} parent=1 // pred_check
      _
    $region15: #{tpu_custom_call.1} parent=1 // pred_check_branch
      %38 = sbr.rel (0) target = $region17
    $region16: #{tpu_custom_call.1} parent=1 // pred_region
      %40 = dma.done [#allocation4], 128
    $region17: #{tpu_custom_call.1} parent=1 // pred_fallthru
      _
    %41 = vsyncpa [#allocation3], 1
    %42 = vsyncpa [#allocation4], 1

</llo_original>
